<compile_context>
chip_gen: v5e
topology: v5e:2x2
jax: 0.10.0
libtpu: 0.0.40
codegen_flags: <defaults>
</compile_context>

<pallas_src>
import math

import jax
import jax.numpy as jnp
from jax.experimental import pallas as pl
from jax.experimental.pallas import tpu as pltpu


def _round_up(x, m):
    return ((x + m - 1) // m) * m


def _choose_rows(H, W):
    """Output rows per grid step: ~2K patch rows/tile, rows | H, >= 2 row blocks."""
    target = max(1, 2048 // max(W, 1))
    divisors = [d for d in range(1, H + 1) if H % d == 0]
    fitting = [d for d in divisors if d <= target]
    rows = max(fitting) if fitting else 1
    if rows == H and H > 1:                  # keep >= 2 row blocks per image
        rows = max(d for d in divisors if d < H)
    return rows


def _tiled_bytes(shape, itemsize):
    """Approx. VMEM footprint of a block ((8,128)-tiled last two dims)."""
    shape = (1, 1) + tuple(shape)
    lead = 1
    for d in shape[:-2]:
        lead *= d
    return lead * _round_up(shape[-2], 8) * _round_up(shape[-1], 128) * itemsize


def subpixel_shuffle_conv_block(x_nchw, w_oihw, bias, alpha, *, compute_dtype=None):
    """conv3x3(pad=1) -> PixelShuffle(2) -> PReLU(scalar).  NCHW in / NCHW out."""
    N, Cin, H, W = x_nchw.shape
    HID = w_oihw.shape[0]
    assert HID % 4 == 0, "hidden must be divisible by 4 for PixelShuffle(2)"
    Cout = HID // 4

    K_real = 9 * Cin
    K_pad = _round_up(K_real, 128)           # lane-dense patch tile / clean MXU fill
    rows = _choose_rows(H, W)

    cdt = (x_nchw.dtype if compute_dtype is None
           else jax.dtypes.canonicalize_dtype(compute_dtype))

    # ---- XLA glue on the (small) input only: NCHW -> zero-padded NHWC --------
    x_img = jnp.transpose(x_nchw, (0, 2, 3, 1))                  # (N, H, W, Cin)
    x_img = jnp.pad(x_img, ((0, 0), (1, 1), (1, 1), (0, 0)))     # conv padding=1
    x_img = x_img.astype(cdt)

    # (O,I,kh,kw) -> (kh,kw,I,O) -> (9*Cin, HID); zero rows up to K_pad.
    w2 = jnp.transpose(w_oihw, (2, 3, 1, 0)).reshape(K_real, HID)
    w2 = jnp.pad(w2, ((0, K_pad - K_real), (0, 0))).astype(cdt)
    b2 = bias.reshape(1, HID).astype(jnp.float32)
    alpha_r = jnp.asarray(alpha, jnp.float32).reshape(1)

    taps = [(dy, dx) for dy in range(3) for dx in range(3)]

    def kernel(alpha_ref, x_ref, w_ref, b_ref, o_ref, p_ref):
        # alpha_ref : SMEM (1,)              PReLU scalar
        # x_ref     : (1, H+2, W+2, Cin)     whole padded image of batch n (VMEM)
        # w_ref     : (K_pad, HID)           im2col weights (zero rows >= 9*Cin)
        # b_ref     : (1, HID)               bias (f32)
        # o_ref     : (1, rows, W, HID)      conv + bias + PReLU output rows
        # p_ref     : (rows, W, K_pad)       VMEM patch scratch (lane-dense K)
        r = pl.program_id(1)
        row0 = r * rows

        # In-VMEM im2col: 9 shifted slices -> patch columns; zero the K tail
        # every step (scratch is uninitialized and per-core persistent).
        for t, (dy, dx) in enumerate(taps):
            p_ref[:, :, t * Cin:(t + 1) * Cin] = x_ref[
                0, pl.ds(row0 + dy, rows), dx:dx + W, :]
        if K_pad > K_real:
            p_ref[:, :, K_real:] = jnp.zeros((rows, W, K_pad - K_real), p_ref.dtype)

        # One MXU contraction for all 9 taps / all channels, f32 accumulation.
        p = p_ref[...].reshape(rows * W, K_pad)
        acc = jnp.dot(p, w_ref[...], preferred_element_type=jnp.float32)
        acc = acc + b_ref[...]

        # Scalar PReLU (commutes with PixelShuffle; num_parameters=1 only).
        alpha_v = alpha_ref[0]
        out = jnp.where(acc > 0, acc, alpha_v * acc)
        o_ref[...] = out.reshape(1, rows, W, HID).astype(o_ref.dtype)

    isz = cdt.itemsize
    osz = x_nchw.dtype.itemsize
    vmem_est = (2 * _tiled_bytes((1, H + 2, W + 2, Cin), isz)        # input (dbl-buf)
                + _tiled_bytes((K_pad, HID), isz)                    # weights
                + _tiled_bytes((1, HID), 4)                          # bias
                + 2 * _tiled_bytes((1, rows, W, HID), osz)           # output (dbl-buf)
                + _tiled_bytes((rows, W, K_pad), isz))               # patch scratch
    vmem_limit = int(min(max(2 * vmem_est + (1 << 20), 16 << 20), 32 << 20))

    conv_nhwc = pl.pallas_call(
        kernel,
        out_shape=jax.ShapeDtypeStruct((N, H, W, HID), x_nchw.dtype),
        grid=(N, H // rows),
        in_specs=[
            pl.BlockSpec(memory_space=pltpu.MemorySpace.SMEM),                 # alpha
            pl.BlockSpec((1, H + 2, W + 2, Cin), lambda n, r: (n, 0, 0, 0)),   # image
            pl.BlockSpec((K_pad, HID), lambda n, r: (0, 0)),                   # weights
            pl.BlockSpec((1, HID), lambda n, r: (0, 0)),                       # bias
        ],
        out_specs=pl.BlockSpec((1, rows, W, HID), lambda n, r: (n, r, 0, 0)),
        scratch_shapes=[pltpu.VMEM((rows, W, K_pad), cdt)],
        compiler_params=pltpu.CompilerParams(
            dimension_semantics=("parallel", "parallel"),
            vmem_limit_bytes=vmem_limit,
        ),
    )(alpha_r, x_img, w2, b2)

    # ---- PixelShuffle(2) + NHWC->NCHW: ONE fused reshape/transpose pass ------
    y = conv_nhwc.reshape(N, H, W, Cout, 2, 2)
    y = jnp.transpose(y, (0, 3, 1, 4, 2, 5))
    return y.reshape(N, Cout, 2 * H, 2 * W)


if __name__ == "__main__":
    key = jax.random.PRNGKey(0)
    k_x, k_w, k_b = jax.random.split(key, 3)

    # Small shapes consistent with the module (hidden kept divisible by 4).
    N, Cin, H, W = 2, 4, 16, 16
    HID = 32

    x = jax.random.normal(k_x, (N, Cin, H, W), dtype=jnp.float32)

    # Deterministic parameter init (PyTorch-style uniform bounds).
    fan_in = Cin * 3 * 3
    bound = 1.0 / math.sqrt(fan_in)
    w = jax.random.uniform(k_w, (HID, Cin, 3, 3), jnp.float32, -bound, bound)
    b = jax.random.uniform(k_b, (HID,), jnp.float32, -bound, bound)
    alpha = 0.25  # nn.PReLU(num_parameters=1, init=0.25)

    out = subpixel_shuffle_conv_block(x, w, b, alpha)
    out = jax.block_until_ready(out)

    # Reference (plain JAX) for a correctness sanity check.
    ref_conv = jax.lax.conv_general_dilated(
        x, w, window_strides=(1, 1), padding=((1, 1), (1, 1)),
        dimension_numbers=("NCHW", "OIHW", "NCHW"),
    ) + b[None, :, None, None]
    Cout = HID // 4
    ref = ref_conv.reshape(N, Cout, 2, 2, H, W)
    ref = jnp.transpose(ref, (0, 1, 4, 2, 5, 3)).reshape(N, Cout, 2 * H, 2 * W)
    ref = jnp.where(ref > 0, ref, alpha * ref)

    assert out.shape == (N, Cout, 2 * H, 2 * W), out.shape
    assert jnp.allclose(out, ref, atol=1e-4, rtol=1e-4)

    # bf16 input/weight feed (f32 accumulation) — halves input-side HBM reads
    # on v6e/v7x; looser tolerance per the review note.
    out_bf16 = jax.block_until_ready(
        subpixel_shuffle_conv_block(x, w, b, alpha, compute_dtype=jnp.bfloat16))
    assert out_bf16.shape == ref.shape
    assert jnp.allclose(out_bf16, ref, atol=6e-2, rtol=6e-2)

    print("KERNEL_OK")
</pallas_src>

<mosaic_0001>
module attributes {stable_mosaic.version = 11 : i64} {
  func.func @kernel(%arg0: i32, %arg1: i32, %arg2: memref<1xf32, #tpu.memory_space<smem>>, %arg3: memref<1x18x18x4xf32, #tpu.memory_space<vmem>>, %arg4: memref<128x32xf32, #tpu.memory_space<vmem>>, %arg5: memref<1x32xf32, #tpu.memory_space<vmem>>, %arg6: memref<1x8x16x32xf32, #tpu.memory_space<vmem>>, %arg7: memref<8x16x128xf32, #tpu.memory_space<vmem>>) attributes {dimension_semantics = [#tpu.dimension_semantics<parallel>, #tpu.dimension_semantics<parallel>], iteration_bounds = array<i64: 2, 2>, scalar_prefetch = 0 : i64, scratch_operands = 1 : i64, tpu.core_type = #tpu.core_type<tc>, window_params = [{transform_indices = @transform_0, window_bounds = array<i64: 1>}, {transform_indices = @transform_1, window_bounds = array<i64: 1, 18, 18, 4>}, {pipeline_mode = #tpu.pipeline_mode<synchronous>, transform_indices = @transform_2, window_bounds = array<i64: 128, 32>}, {pipeline_mode = #tpu.pipeline_mode<synchronous>, transform_indices = @transform_3, window_bounds = array<i64: 1, 32>}, {transform_indices = @transform_4, window_bounds = array<i64: 1, 8, 16, 32>}]} {
    %c8_i32 = arith.constant 8 : i32
    %0 = arith.muli %arg1, %c8_i32 : i32
    %c0_i32 = arith.constant 0 : i32
    %1 = arith.addi %0, %c0_i32 : i32
    %c0 = arith.constant 0 : index
    %2 = arith.index_cast %1 : i32 to index
    %c0_0 = arith.constant 0 : index
    %c0_1 = arith.constant 0 : index
    %3 = vector.load %arg3[%c0, %2, %c0_0, %c0_1] : memref<1x18x18x4xf32, #tpu.memory_space<vmem>>, vector<1x8x16x4xf32>
    %4 = vector.shape_cast %3 : vector<1x8x16x4xf32> to vector<8x16x4xf32>
    %c0_2 = arith.constant 0 : index
    %c0_3 = arith.constant 0 : index
    %c0_4 = arith.constant 0 : index
    %5 = vector.load %arg7[%c0_2, %c0_3, %c0_4] : memref<8x16x128xf32, #tpu.memory_space<vmem>>, vector<8x16x4xf32>
    tpu.vector_store %arg7[%c0_2, %c0_3, %c0_4], %4 {strides = array<i32>} : memref<8x16x128xf32, #tpu.memory_space<vmem>>, vector<8x16x4xf32>,
    %c0_i32_5 = arith.constant 0 : i32
    %6 = arith.addi %0, %c0_i32_5 : i32
    %c0_6 = arith.constant 0 : index
    %7 = arith.index_cast %6 : i32 to index
    %c1 = arith.constant 1 : index
    %c0_7 = arith.constant 0 : index
    %8 = vector.load %arg3[%c0_6, %7, %c1, %c0_7] : memref<1x18x18x4xf32, #tpu.memory_space<vmem>>, vector<1x8x16x4xf32>
    %9 = vector.shape_cast %8 : vector<1x8x16x4xf32> to vector<8x16x4xf32>
    %c0_8 = arith.constant 0 : index
    %c0_9 = arith.constant 0 : index
    %c4 = arith.constant 4 : index
    %10 = vector.load %arg7[%c0_8, %c0_9, %c4] : memref<8x16x128xf32, #tpu.memory_space<vmem>>, vector<8x16x4xf32>
    tpu.vector_store %arg7[%c0_8, %c0_9, %c4], %9 {strides = array<i32>} : memref<8x16x128xf32, #tpu.memory_space<vmem>>, vector<8x16x4xf32>,
    %c0_i32_10 = arith.constant 0 : i32
    %11 = arith.addi %0, %c0_i32_10 : i32
    %c0_11 = arith.constant 0 : index
    %12 = arith.index_cast %11 : i32 to index
    %c2 = arith.constant 2 : index
    %c0_12 = arith.constant 0 : index
    %13 = vector.load %arg3[%c0_11, %12, %c2, %c0_12] : memref<1x18x18x4xf32, #tpu.memory_space<vmem>>, vector<1x8x16x4xf32>
    %14 = vector.shape_cast %13 : vector<1x8x16x4xf32> to vector<8x16x4xf32>
    %c0_13 = arith.constant 0 : index
    %c0_14 = arith.constant 0 : index
    %c8 = arith.constant 8 : index
    %15 = vector.load %arg7[%c0_13, %c0_14, %c8] : memref<8x16x128xf32, #tpu.memory_space<vmem>>, vector<8x16x4xf32>
    tpu.vector_store %arg7[%c0_13, %c0_14, %c8], %14 {strides = array<i32>} : memref<8x16x128xf32, #tpu.memory_space<vmem>>, vector<8x16x4xf32>,
    %c1_i32 = arith.constant 1 : i32
    %16 = arith.addi %0, %c1_i32 : i32
    %c0_15 = arith.constant 0 : index
    %17 = arith.index_cast %16 : i32 to index
    %c0_16 = arith.constant 0 : index
    %c0_17 = arith.constant 0 : index
    %18 = vector.load %arg3[%c0_15, %17, %c0_16, %c0_17] : memref<1x18x18x4xf32, #tpu.memory_space<vmem>>, vector<1x8x16x4xf32>
    %19 = vector.shape_cast %18 : vector<1x8x16x4xf32> to vector<8x16x4xf32>
    %c0_18 = arith.constant 0 : index
    %c0_19 = arith.constant 0 : index
    %c12 = arith.constant 12 : index
    %20 = vector.load %arg7[%c0_18, %c0_19, %c12] : memref<8x16x128xf32, #tpu.memory_space<vmem>>, vector<8x16x4xf32>
    tpu.vector_store %arg7[%c0_18, %c0_19, %c12], %19 {strides = array<i32>} : memref<8x16x128xf32, #tpu.memory_space<vmem>>, vector<8x16x4xf32>,
    %c1_i32_20 = arith.constant 1 : i32
    %21 = arith.addi %0, %c1_i32_20 : i32
    %c0_21 = arith.constant 0 : index
    %22 = arith.index_cast %21 : i32 to index
    %c1_22 = arith.constant 1 : index
    %c0_23 = arith.constant 0 : index
    %23 = vector.load %arg3[%c0_21, %22, %c1_22, %c0_23] : memref<1x18x18x4xf32, #tpu.memory_space<vmem>>, vector<1x8x16x4xf32>
    %24 = vector.shape_cast %23 : vector<1x8x16x4xf32> to vector<8x16x4xf32>
    %c0_24 = arith.constant 0 : index
    %c0_25 = arith.constant 0 : index
    %c16 = arith.constant 16 : index
    %25 = vector.load %arg7[%c0_24, %c0_25, %c16] : memref<8x16x128xf32, #tpu.memory_space<vmem>>, vector<8x16x4xf32>
    tpu.vector_store %arg7[%c0_24, %c0_25, %c16], %24 {strides = array<i32>} : memref<8x16x128xf32, #tpu.memory_space<vmem>>, vector<8x16x4xf32>,
    %c1_i32_26 = arith.constant 1 : i32
    %26 = arith.addi %0, %c1_i32_26 : i32
    %c0_27 = arith.constant 0 : index
    %27 = arith.index_cast %26 : i32 to index
    %c2_28 = arith.constant 2 : index
    %c0_29 = arith.constant 0 : index
    %28 = vector.load %arg3[%c0_27, %27, %c2_28, %c0_29] : memref<1x18x18x4xf32, #tpu.memory_space<vmem>>, vector<1x8x16x4xf32>
    %29 = vector.shape_cast %28 : vector<1x8x16x4xf32> to vector<8x16x4xf32>
    %c0_30 = arith.constant 0 : index
    %c0_31 = arith.constant 0 : index
    %c20 = arith.constant 20 : index
    %30 = vector.load %arg7[%c0_30, %c0_31, %c20] : memref<8x16x128xf32, #tpu.memory_space<vmem>>, vector<8x16x4xf32>
    tpu.vector_store %arg7[%c0_30, %c0_31, %c20], %29 {strides = array<i32>} : memref<8x16x128xf32, #tpu.memory_space<vmem>>, vector<8x16x4xf32>,
    %c2_i32 = arith.constant 2 : i32
    %31 = arith.addi %0, %c2_i32 : i32
    %c0_32 = arith.constant 0 : index
    %32 = arith.index_cast %31 : i32 to index
    %c0_33 = arith.constant 0 : index
    %c0_34 = arith.constant 0 : index
    %33 = vector.load %arg3[%c0_32, %32, %c0_33, %c0_34] : memref<1x18x18x4xf32, #tpu.memory_space<vmem>>, vector<1x8x16x4xf32>
    %34 = vector.shape_cast %33 : vector<1x8x16x4xf32> to vector<8x16x4xf32>
    %c0_35 = arith.constant 0 : index
    %c0_36 = arith.constant 0 : index
    %c24 = arith.constant 24 : index
    %35 = vector.load %arg7[%c0_35, %c0_36, %c24] : memref<8x16x128xf32, #tpu.memory_space<vmem>>, vector<8x16x4xf32>
    tpu.vector_store %arg7[%c0_35, %c0_36, %c24], %34 {strides = array<i32>} : memref<8x16x128xf32, #tpu.memory_space<vmem>>, vector<8x16x4xf32>,
    %c2_i32_37 = arith.constant 2 : i32
    %36 = arith.addi %0, %c2_i32_37 : i32
    %c0_38 = arith.constant 0 : index
    %37 = arith.index_cast %36 : i32 to index
    %c1_39 = arith.constant 1 : index
    %c0_40 = arith.constant 0 : index
    %38 = vector.load %arg3[%c0_38, %37, %c1_39, %c0_40] : memref<1x18x18x4xf32, #tpu.memory_space<vmem>>, vector<1x8x16x4xf32>
    %39 = vector.shape_cast %38 : vector<1x8x16x4xf32> to vector<8x16x4xf32>
    %c0_41 = arith.constant 0 : index
    %c0_42 = arith.constant 0 : index
    %c28 = arith.constant 28 : index
    %40 = vector.load %arg7[%c0_41, %c0_42, %c28] : memref<8x16x128xf32, #tpu.memory_space<vmem>>, vector<8x16x4xf32>
    tpu.vector_store %arg7[%c0_41, %c0_42, %c28], %39 {strides = array<i32>} : memref<8x16x128xf32, #tpu.memory_space<vmem>>, vector<8x16x4xf32>,
    %c2_i32_43 = arith.constant 2 : i32
    %41 = arith.addi %0, %c2_i32_43 : i32
    %c0_44 = arith.constant 0 : index
    %42 = arith.index_cast %41 : i32 to index
    %c2_45 = arith.constant 2 : index
    %c0_46 = arith.constant 0 : index
    %43 = vector.load %arg3[%c0_44, %42, %c2_45, %c0_46] : memref<1x18x18x4xf32, #tpu.memory_space<vmem>>, vector<1x8x16x4xf32>
    %44 = vector.shape_cast %43 : vector<1x8x16x4xf32> to vector<8x16x4xf32>
    %c0_47 = arith.constant 0 : index
    %c0_48 = arith.constant 0 : index
    %c32 = arith.constant 32 : index
    %45 = vector.load %arg7[%c0_47, %c0_48, %c32] : memref<8x16x128xf32, #tpu.memory_space<vmem>>, vector<8x16x4xf32>
    tpu.vector_store %arg7[%c0_47, %c0_48, %c32], %44 {strides = array<i32>} : memref<8x16x128xf32, #tpu.memory_space<vmem>>, vector<8x16x4xf32>,
    %cst = arith.constant 0.000000e+00 : f32
    %46 = vector.broadcast %cst : f32 to vector<8x16x92xf32>
    %c0_49 = arith.constant 0 : index
    %c0_50 = arith.constant 0 : index
    %c36 = arith.constant 36 : index
    %47 = vector.load %arg7[%c0_49, %c0_50, %c36] : memref<8x16x128xf32, #tpu.memory_space<vmem>>, vector<8x16x92xf32>
    tpu.vector_store %arg7[%c0_49, %c0_50, %c36], %46 {strides = array<i32>} : memref<8x16x128xf32, #tpu.memory_space<vmem>>, vector<8x16x92xf32>,
    %c0_51 = arith.constant 0 : index
    %c0_52 = arith.constant 0 : index
    %c0_53 = arith.constant 0 : index
    %48 = vector.load %arg7[%c0_51, %c0_52, %c0_53] : memref<8x16x128xf32, #tpu.memory_space<vmem>>, vector<8x16x128xf32>
    %49 = vector.shape_cast %48 : vector<8x16x128xf32> to vector<128x128xf32>
    %c0_54 = arith.constant 0 : index
    %c0_55 = arith.constant 0 : index
    %50 = vector.load %arg4[%c0_54, %c0_55] : memref<128x32xf32, #tpu.memory_space<vmem>>, vector<128x32xf32>
    %cst_56 = arith.constant dense<0.000000e+00> : vector<128x32xf32>
    %51 = tpu.matmul %49, %50, %cst_56 {dimension_numbers = #tpu.dot_dimension_numbers<[1], [0], [0], [1], [0, 0, 1, 1], [], []>} : vector<128x128xf32>, vector<128x32xf32>, vector<128x32xf32> -> vector<128x32xf32>
    %c0_57 = arith.constant 0 : index
    %c0_58 = arith.constant 0 : index
    %52 = vector.load %arg5[%c0_57, %c0_58] : memref<1x32xf32, #tpu.memory_space<vmem>>, vector<1x32xf32>
    %53 = vector.broadcast %52 : vector<1x32xf32> to vector<128x32xf32>
    %54 = arith.addf %51, %53 : vector<128x32xf32>
    %c0_59 = arith.constant 0 : index
    %55 = memref.load %arg2[%c0_59] : memref<1xf32, #tpu.memory_space<smem>>
    %cst_60 = arith.constant 0.000000e+00 : f32
    %56 = vector.broadcast %cst_60 : f32 to vector<128x32xf32>
    %57 = arith.cmpf ogt, %54, %56 : vector<128x32xf32>
    %58 = vector.broadcast %55 : f32 to vector<128x32xf32>
    %59 = arith.mulf %58, %54 : vector<128x32xf32>
    %60 = arith.select %57, %54, %59 : vector<128x32xi1>, vector<128x32xf32>
    %61 = vector.shape_cast %60 : vector<128x32xf32> to vector<1x8x16x32xf32>
    %c0_61 = arith.constant 0 : index
    %c0_62 = arith.constant 0 : index
    %c0_63 = arith.constant 0 : index
    %c0_64 = arith.constant 0 : index
    %62 = vector.load %arg6[%c0_61, %c0_62, %c0_63, %c0_64] : memref<1x8x16x32xf32, #tpu.memory_space<vmem>>, vector<1x8x16x32xf32>
    tpu.vector_store %arg6[%c0_61, %c0_62, %c0_63, %c0_64], %61 {strides = array<i32>} : memref<1x8x16x32xf32, #tpu.memory_space<vmem>>, vector<1x8x16x32xf32>,
    return
  }
  func.func @transform_0(%arg0: i32, %arg1: i32) -> i32 {
    %c0_i32 = arith.constant 0 : i32
    %c0_i32_0 = arith.constant 0 : i32
    return %c0_i32 : i32
  }
  func.func @transform_1(%arg0: i32, %arg1: i32) -> (i32, i32, i32, i32) {
    %c0_i32 = arith.constant 0 : i32
    %c0_i32_0 = arith.constant 0 : i32
    %c0_i32_1 = arith.constant 0 : i32
    %c0_i32_2 = arith.constant 0 : i32
    return %arg0, %c0_i32, %c0_i32_0, %c0_i32_1 : i32, i32, i32, i32
  }
  func.func @transform_2(%arg0: i32, %arg1: i32) -> (i32, i32) {
    %c0_i32 = arith.constant 0 : i32
    %c0_i32_0 = arith.constant 0 : i32
    %c0_i32_1 = arith.constant 0 : i32
    return %c0_i32, %c0_i32_0 : i32, i32
  }
  func.func @transform_3(%arg0: i32, %arg1: i32) -> (i32, i32) {
    %c0_i32 = arith.constant 0 : i32
    %c0_i32_0 = arith.constant 0 : i32
    %c0_i32_1 = arith.constant 0 : i32
    return %c0_i32, %c0_i32_0 : i32, i32
  }
  func.func @transform_4(%arg0: i32, %arg1: i32) -> (i32, i32, i32, i32) {
    %c0_i32 = arith.constant 0 : i32
    %c0_i32_0 = arith.constant 0 : i32
    %c0_i32_1 = arith.constant 0 : i32
    return %arg0, %arg1, %c0_i32, %c0_i32_0 : i32, i32, i32, i32
  }
}

</mosaic_0001>

<llo_original>
// kernel: tpu_custom_call.1
$region0: #{tpu_custom_call.1}
  #allocation0 [shape = 'u32[]', space=smem, size = 0x4, offset = 0x4, fixed_abs, tag = 'smem constant byte address 0x4 - core index']
  #allocation1 [shape = 'u32[72,128]{1,0:T(1,128)}', space=vmem, size = 0x9000, scoped, tag = 'internal scratch']
  #allocation2 [shape = 'f32[8,16,128]{2,1,0:T(8,128)}', space=vmem, size = 0x10000, scoped, tag = 'scratch operand']
  #allocation3 [shape = 'f32[1]{0:T(128)S(6)}', space=smem, size = 0x200, scoped, tag = 'scoped memory for tpu_custom_call.1']
  %s0 = inlined_call_operand.<no memory space> [shape: f32[1], index: 0, kind: input, shape index: {}]
  %s1 = inlined_call_operand.vmem [shape: f32[2,18,18,4], index: 1, kind: input, shape index: {}]
  %s2 = inlined_call_operand.vmem [shape: f32[128,32], index: 2, kind: input, shape index: {}]
  %s3 = inlined_call_operand.vmem [shape: f32[1,32], index: 3, kind: input, shape index: {}]
  %s4 = inlined_call_operand.hbm [shape: f32[2,16,16,32], index: 4, kind: output, shape index: {}]
  %s5 = sld [smem:[#allocation0]]
  $region49: #{tpu_custom_call.1} parent=0
    _
  %s7 = ssub.s32 1, %s5
  %s8 = scalar_select 0, %s7, %s5
  %9 = sst [smem:[#allocation3]] %s0
  $region1: #{tpu_custom_call.1} parent=0
    #allocation4 [shape = 'u8[131072]{0}', space=vmem, size = 0x20000, scoped, tag = 'output window, operand 0']
    #allocation5 [shape = 's32[2]{0}', space=sflag, size = 0x8, scoped, tag = 'scoped memory for tpu_custom_call.1']
    %10 = vsyncpa [#allocation5], 0
    %s11 = scalar_lea.sflag [#allocation5], 1
    %12 = vsyncpa %s11, 0
    loop: start=0, step=1, limit=6
    $region2: #{tpu_custom_call.1} parent=1 // loop_pre_header
      _
    $region3: #{tpu_custom_call.1} parent=1 // loop_header
      %s14 = sphi 0, %s18
      %p15 = scmp.ge.s32.totalorder %s14, 6
      %s21 = sphi 0, %s33
      %s22 = sphi 0, %s29
      %s23 = sphi 0, %s21
      %s24 = sphi 0, %s22
      %s25 = sphi 0, %s23
      %s26 = sphi 0, %s24
      %s34 = sphi 0, %s34
      %s36 = sphi 0, %s34
      %s37 = sphi 0, %s36
      %s51 = sphi 0, %s37
      %s57 = sphi 0, %s59
      %s60 = sphi 0, %s57
      %s61 = sphi 0, %s60
      %s77 = sphi 0, %s61
      %s81 = sphi 0, %s81
      %s83 = sphi 0, %s81
      %s84 = sphi 0, %s83
      %s98 = sphi 0, %s84
      %s102 = sphi 0, %s102
      %s104 = sphi 0, %s102
      %s105 = sphi 0, %s104
      %s119 = sphi 0, %s105
      %s127 = sphi 0, %s129
      %s130 = sphi 0, %s127
      %s131 = sphi 0, %s130
      %s147 = sphi 0, %s131
    $region4: #{tpu_custom_call.1} parent=1 // loop_header_branch
      %17 = sbr.rel (%p15) target = $region8
    $region5: #{tpu_custom_call.1} parent=1 // loop_body
      %s19 = ssub.s32 %s14, 1
      %s20 = ssub.s32 %s14, 2
      %s27 = sadd.s32 1, %s22
      %p28 = scmp.ge.s32.totalorder %s27, 2
      %s29 = scalar_select %p28, 0, %s27
      %s30 = sadd.s32 1, %s21
      %s31 = scalar_select %p28, %s30, %s21
      %p32 = scmp.ge.s32.totalorder %s31, 2
      %s33 = scalar_select %p32, 0, %s31
      %s35 = sadd.s32 %s34, 1
      %p38 = scmp.eq.s32.totalorder %s14, 3
      %p39 = scmp.ne.s32.totalorder %s34, %s36
      %p40 = scmp.eq.s32.totalorder %s14, 0
      %p41 = por %p39, %p40
      %p42 = scmp.ne.s32.totalorder %s34, %s36
      %p43 = scmp.eq.s32.totalorder %s19, 3
      %p44 = por %p42, %p43
      %p45 = scmp.ne.s32.totalorder %s36, %s37
      %p46 = scmp.eq.s32.totalorder %s19, 0
      %p47 = por %p45, %p46
      %p48 = scmp.ne.s32.totalorder %s36, %s37
      %p49 = scmp.eq.s32.totalorder %s20, 3
      %p50 = por %p48, %p49
      %p52 = scmp.ne.s32.totalorder %s37, %s51
      %p53 = scmp.eq.s32.totalorder %s20, 0
      %p54 = por %p52, %p53
      %s55 = ssub.s32 %s21, %s33
      %p56 = scmp.eq.s32.totalorder %s55, 0
      %s58 = sadd.s32 %s57, 1
      %s59 = scalar_select %p56, %s57, %s58
      %p62 = pneg %p56
      %p63 = scmp.eq.s32.totalorder %s14, 3
      %p64 = por %p62, %p63
      %p65 = scmp.ne.s32.totalorder %s57, %s60
      %p66 = scmp.eq.s32.totalorder %s14, 0
      %p67 = por %p65, %p66
      %p68 = scmp.ne.s32.totalorder %s57, %s60
      %p69 = scmp.eq.s32.totalorder %s19, 3
      %p70 = por %p68, %p69
      %p71 = scmp.ne.s32.totalorder %s60, %s61
      %p72 = scmp.eq.s32.totalorder %s19, 0
      %p73 = por %p71, %p72
      %p74 = scmp.ne.s32.totalorder %s60, %s61
      %p75 = scmp.eq.s32.totalorder %s20, 3
      %p76 = por %p74, %p75
      %p78 = scmp.ne.s32.totalorder %s61, %s77
      %p79 = scmp.eq.s32.totalorder %s20, 0
      %p80 = por %p78, %p79
      %s82 = sadd.s32 %s81, 1
      %p85 = scmp.eq.s32.totalorder %s14, 3
      %p86 = scmp.ne.s32.totalorder %s81, %s83
      %p87 = scmp.eq.s32.totalorder %s14, 0
      %p88 = por %p86, %p87
      %p89 = scmp.ne.s32.totalorder %s81, %s83
      %p90 = scmp.eq.s32.totalorder %s19, 3
      %p91 = por %p89, %p90
      %p92 = scmp.ne.s32.totalorder %s83, %s84
      %p93 = scmp.eq.s32.totalorder %s19, 0
      %p94 = por %p92, %p93
      %p95 = scmp.ne.s32.totalorder %s83, %s84
      %p96 = scmp.eq.s32.totalorder %s20, 3
      %p97 = por %p95, %p96
      %p99 = scmp.ne.s32.totalorder %s84, %s98
      %p100 = scmp.eq.s32.totalorder %s20, 0
      %p101 = por %p99, %p100
      %s103 = sadd.s32 %s102, 1
      %p106 = scmp.eq.s32.totalorder %s14, 3
      %p107 = scmp.ne.s32.totalorder %s102, %s104
      %p108 = scmp.eq.s32.totalorder %s14, 0
      %p109 = por %p107, %p108
      %p110 = scmp.ne.s32.totalorder %s102, %s104
      %p111 = scmp.eq.s32.totalorder %s19, 3
      %p112 = por %p110, %p111
      %p113 = scmp.ne.s32.totalorder %s104, %s105
      %p114 = scmp.eq.s32.totalorder %s19, 0
      %p115 = por %p113, %p114
      %p116 = scmp.ne.s32.totalorder %s104, %s105
      %p117 = scmp.eq.s32.totalorder %s20, 3
      %p118 = por %p116, %p117
      %p120 = scmp.ne.s32.totalorder %s105, %s119
      %p121 = scmp.eq.s32.totalorder %s20, 0
      %p122 = por %p120, %p121
      %s123 = ssub.s32 %s21, %s33
      %s124 = ssub.s32 %s22, %s29
      %s125 = sor.u32 %s123, %s124
      %p126 = scmp.eq.s32.totalorder %s125, 0
      %s128 = sadd.s32 %s127, 1
      %s129 = scalar_select %p126, %s127, %s128
      %p132 = pneg %p126
      %p133 = scmp.eq.s32.totalorder %s14, 3
      %p134 = por %p132, %p133
      %p135 = scmp.ne.s32.totalorder %s127, %s130
      %p136 = scmp.eq.s32.totalorder %s14, 0
      %p137 = por %p135, %p136
      %p138 = scmp.ne.s32.totalorder %s127, %s130
      %p139 = scmp.eq.s32.totalorder %s19, 3
      %p140 = por %p138, %p139
      %p141 = scmp.ne.s32.totalorder %s130, %s131
      %p142 = scmp.eq.s32.totalorder %s19, 0
      %p143 = por %p141, %p142
      %p144 = scmp.ne.s32.totalorder %s130, %s131
      %p145 = scmp.eq.s32.totalorder %s20, 3
      %p146 = por %p144, %p145
      %p148 = scmp.ne.s32.totalorder %s131, %s147
      %p149 = scmp.eq.s32.totalorder %s20, 0
      %p150 = por %p148, %p149
      %p151 = scmp.le.s32.totalorder 1, %s14
      %p152 = scmp.lt.s32.totalorder %s14, 5
      %p153 = pnand %p151, %p152
      %p154 = pneg %p153
      // Predicated region
      $region9: #{tpu_custom_call.1} parent=5 // pred_check
        _
      $region10: #{tpu_custom_call.1} parent=5 // pred_check_branch
        %156 = sbr.rel (%p153) target = $region12
      $region11: #{tpu_custom_call.1} parent=5 // pred_region
        %s157 = ssub.s32 %s14, 1
        // Predicated region
        $region13: #{tpu_custom_call.1} parent=11 // pred_check
          %p158 = pneg %p47
        $region14: #{tpu_custom_call.1} parent=11 // pred_check_branch
          %160 = sbr.rel (%p158) target = $region16
        $region15: #{tpu_custom_call.1} parent=11 // pred_region
          _
        $region16: #{tpu_custom_call.1} parent=11 // pred_fallthru
          _
        // Predicated region
        $region17: #{tpu_custom_call.1} parent=11 // pred_check
          %p161 = pneg %p94
        $region18: #{tpu_custom_call.1} parent=11 // pred_check_branch
          %163 = sbr.rel (%p161) target = $region20
        $region19: #{tpu_custom_call.1} parent=11 // pred_region
          _
        $region20: #{tpu_custom_call.1} parent=11 // pred_fallthru
          _
        // Predicated region
        $region21: #{tpu_custom_call.1} parent=11 // pred_check
          %p164 = pneg %p115
        $region22: #{tpu_custom_call.1} parent=11 // pred_check_branch
          %166 = sbr.rel (%p164) target = $region24
        $region23: #{tpu_custom_call.1} parent=11 // pred_region
          _
        $region24: #{tpu_custom_call.1} parent=11 // pred_fallthru
          _
      $region12: #{tpu_custom_call.1} parent=5 // pred_fallthru
        _
      %p167 = scmp.lt.s32.totalorder %s14, 4
      // Predicated region
      $region25: #{tpu_custom_call.1} parent=5 // pred_check
        %p168 = pneg %p167
      $region26: #{tpu_custom_call.1} parent=5 // pred_check_branch
        %170 = sbr.rel (%p168) target = $region28
      $region27: #{tpu_custom_call.1} parent=5 // pred_region
        // Predicated region
        $region29: #{tpu_custom_call.1} parent=27 // pred_check
          %p171 = pneg %p67
        $region30: #{tpu_custom_call.1} parent=27 // pred_check_branch
          %173 = sbr.rel (%p171) target = $region32
        $region31: #{tpu_custom_call.1} parent=27 // pred_region
          %p174 = scmp.lt.s32.totalorder %s21, 1
          %s175 = scalar_select %p174, %s21, 1
          %s176 = smul.addr %s175, 54
          %s177 = smul.addr %s176, 8
          %s178 = scalar_lea.vmem %s1, %s177
        $region32: #{tpu_custom_call.1} parent=27 // pred_fallthru
          _
      $region28: #{tpu_custom_call.1} parent=5 // pred_fallthru
        _
      %p179 = scmp.le.s32.totalorder 1, %s14
      %p180 = scmp.lt.s32.totalorder %s14, 5
      %p181 = pnand %p179, %p180
      %p182 = pneg %p181
      // Predicated region
      $region33: #{tpu_custom_call.1} parent=5 // pred_check
        _
      $region34: #{tpu_custom_call.1} parent=5 // pred_check_branch
        %184 = sbr.rel (%p181) target = $region36
      $region35: #{tpu_custom_call.1} parent=5 // pred_region
        %s185 = ssub.s32 %s14, 1
        %p186 = pneg %p47
        %p187 = pneg %p44
        %p188 = scmp.lt.s32.totalorder %s23, 1
        %s189 = scalar_select %p188, %s23, 1
        %s190 = smul.addr %s189, 54
        %s191 = smul.addr %s190, 8
        %s192 = scalar_lea.vmem %s1, %s191
        %p193 = pneg %p73
        %p194 = pneg %p70
        %p195 = pneg %p94
        %p196 = pneg %p91
        %p197 = pneg %p115
        %p198 = pneg %p112
        %p199 = pneg %p143
        %p200 = pneg %p140
        %s201 = sand.u32 %s130, 1
        %s202 = scalar_lea.sflag [#allocation5], %s201
        %s203 = sand.u32 %s130, 1
        %s204 = smul.addr %s203, 128
        %s205 = scalar_lea.vmem [#allocation4], %s204
        %p206 = scmp.lt.s32.totalorder %s23, 1
        %s207 = scalar_select %p206, %s23, 1
        %s208 = smul.addr %s207, 54
        %s209 = smul.addr %s208, 8
        %s210 = scalar_lea.vmem %s1, %s209
        %s211 = smul.u32 8, %s24
        %s212 = smul.u32 %s24, 8
        %s213 = smul.u32 %s212, 24
        %s214 = scalar_lea.vmem %s210, %s213
        %v215 = vld [vmem:[%s214] sm:$0xff]
        %v216 = vld [vmem:[%s214 + $0x8] sm:$0xff]
        %v217 = vld [vmem:[%s214 + $0x18] sm:$0xff]
        %v218 = vld [vmem:[%s214 + $0x20] sm:$0xff]
        %v219 = vld [vmem:[%s214 + $0x30] sm:$0xff]
        %v220 = vld [vmem:[%s214 + $0x38] sm:$0xff]
        %v221 = vld [vmem:[%s214 + $0x48] sm:$0xff]
        %v222 = vld [vmem:[%s214 + $0x50] sm:$0xff]
        %v223 = vld [vmem:[%s214 + $0x60] sm:$0xff]
        %v224 = vld [vmem:[%s214 + $0x68] sm:$0xff]
        %v225 = vld [vmem:[%s214 + $0x78] sm:$0xff]
        %v226 = vld [vmem:[%s214 + $0x80] sm:$0xff]
        %v227 = vld [vmem:[%s214 + $0x90] sm:$0xff]
        %v228 = vld [vmem:[%s214 + $0x98] sm:$0xff]
        %v229 = vld [vmem:[%s214 + $0xa8] sm:$0xff]
        %v230 = vld [vmem:[%s214 + $0xb0] sm:$0xff]
        %vm231 = vcmask 31744
        %232 = vst.msk [vmem:[#allocation2] sm:$0xff] %vm231, %v215
        %233 = vst.msk [vmem:[#allocation2 + $0x8] sm:$0xff] %vm231, %v216
        %234 = vst.msk [vmem:[#allocation2 + $0x10] sm:$0xff] %vm231, %v217
        %235 = vst.msk [vmem:[#allocation2 + $0x18] sm:$0xff] %vm231, %v218
        %236 = vst.msk [vmem:[#allocation2 + $0x20] sm:$0xff] %vm231, %v219
        %237 = vst.msk [vmem:[#allocation2 + $0x28] sm:$0xff] %vm231, %v220
        %238 = vst.msk [vmem:[#allocation2 + $0x30] sm:$0xff] %vm231, %v221
        %239 = vst.msk [vmem:[#allocation2 + $0x38] sm:$0xff] %vm231, %v222
        %240 = vst.msk [vmem:[#allocation2 + $0x40] sm:$0xff] %vm231, %v223
        %241 = vst.msk [vmem:[#allocation2 + $0x48] sm:$0xff] %vm231, %v224
        %242 = vst.msk [vmem:[#allocation2 + $0x50] sm:$0xff] %vm231, %v225
        %243 = vst.msk [vmem:[#allocation2 + $0x58] sm:$0xff] %vm231, %v226
        %244 = vst.msk [vmem:[#allocation2 + $0x60] sm:$0xff] %vm231, %v227
        %245 = vst.msk [vmem:[#allocation2 + $0x68] sm:$0xff] %vm231, %v228
        %246 = vst.msk [vmem:[#allocation2 + $0x70] sm:$0xff] %vm231, %v229
        %247 = vst.msk [vmem:[#allocation2 + $0x78] sm:$0xff] %vm231, %v230
        %v248 = vld [vmem:[%s214 + $0x1] sm:$0xff]
        %v249 = vld [vmem:[%s214 + $0x9] sm:$0xff]
        %v250 = vld [vmem:[%s214 + $0x19] sm:$0xff]
        %v251 = vld [vmem:[%s214 + $0x21] sm:$0xff]
        %v252 = vld [vmem:[%s214 + $0x31] sm:$0xff]
        %v253 = vld [vmem:[%s214 + $0x39] sm:$0xff]
        %v254 = vld [vmem:[%s214 + $0x49] sm:$0xff]
        %v255 = vld [vmem:[%s214 + $0x51] sm:$0xff]
        %v256 = vld [vmem:[%s214 + $0x61] sm:$0xff]
        %v257 = vld [vmem:[%s214 + $0x69] sm:$0xff]
        %v258 = vld [vmem:[%s214 + $0x79] sm:$0xff]
        %v259 = vld [vmem:[%s214 + $0x81] sm:$0xff]
        %v260 = vld [vmem:[%s214 + $0x91] sm:$0xff]
        %v261 = vld [vmem:[%s214 + $0x99] sm:$0xff]
        %v262 = vld [vmem:[%s214 + $0xa9] sm:$0xff]
        %v263 = vld [vmem:[%s214 + $0xb1] sm:$0xff]
        %280 = vrot.lane.b32.xlu0 %v248, 4
        %v281 = vpop.permute.xlu0 %280
        %282 = vrot.lane.b32.xlu0 %v249, 4
        %v283 = vpop.permute.xlu0 %282
        %284 = vrot.lane.b32.xlu0 %v250, 4
        %v285 = vpop.permute.xlu0 %284
        %286 = vrot.lane.b32.xlu0 %v251, 4
        %v287 = vpop.permute.xlu0 %286
        %288 = vrot.lane.b32.xlu0 %v252, 4
        %v289 = vpop.permute.xlu0 %288
        %290 = vrot.lane.b32.xlu0 %v253, 4
        %v291 = vpop.permute.xlu0 %290
        %292 = vrot.lane.b32.xlu0 %v254, 4
        %v293 = vpop.permute.xlu0 %292
        %294 = vrot.lane.b32.xlu0 %v255, 4
        %v295 = vpop.permute.xlu0 %294
        %296 = vrot.lane.b32.xlu0 %v256, 4
        %v297 = vpop.permute.xlu0 %296
        %298 = vrot.lane.b32.xlu0 %v257, 4
        %v299 = vpop.permute.xlu0 %298
        %300 = vrot.lane.b32.xlu0 %v258, 4
        %v301 = vpop.permute.xlu0 %300
        %302 = vrot.lane.b32.xlu0 %v259, 4
        %v303 = vpop.permute.xlu0 %302
        %304 = vrot.lane.b32.xlu0 %v260, 4
        %v305 = vpop.permute.xlu0 %304
        %306 = vrot.lane.b32.xlu0 %v261, 4
        %v307 = vpop.permute.xlu0 %306
        %308 = vrot.lane.b32.xlu0 %v262, 4
        %v309 = vpop.permute.xlu0 %308
        %310 = vrot.lane.b32.xlu0 %v263, 4
        %v311 = vpop.permute.xlu0 %310
        %vm328 = vcmask 64544
        %329 = vst.msk [vmem:[#allocation2] sm:$0xff] %vm328, %v281
        %330 = vst.msk [vmem:[#allocation2 + $0x8] sm:$0xff] %vm328, %v283
        %331 = vst.msk [vmem:[#allocation2 + $0x10] sm:$0xff] %vm328, %v285
        %332 = vst.msk [vmem:[#allocation2 + $0x18] sm:$0xff] %vm328, %v287
        %333 = vst.msk [vmem:[#allocation2 + $0x20] sm:$0xff] %vm328, %v289
        %334 = vst.msk [vmem:[#allocation2 + $0x28] sm:$0xff] %vm328, %v291
        %335 = vst.msk [vmem:[#allocation2 + $0x30] sm:$0xff] %vm328, %v293
        %336 = vst.msk [vmem:[#allocation2 + $0x38] sm:$0xff] %vm328, %v295
        %337 = vst.msk [vmem:[#allocation2 + $0x40] sm:$0xff] %vm328, %v297
        %338 = vst.msk [vmem:[#allocation2 + $0x48] sm:$0xff] %vm328, %v299
        %339 = vst.msk [vmem:[#allocation2 + $0x50] sm:$0xff] %vm328, %v301
        %340 = vst.msk [vmem:[#allocation2 + $0x58] sm:$0xff] %vm328, %v303
        %341 = vst.msk [vmem:[#allocation2 + $0x60] sm:$0xff] %vm328, %v305
        %342 = vst.msk [vmem:[#allocation2 + $0x68] sm:$0xff] %vm328, %v307
        %343 = vst.msk [vmem:[#allocation2 + $0x70] sm:$0xff] %vm328, %v309
        %344 = vst.msk [vmem:[#allocation2 + $0x78] sm:$0xff] %vm328, %v311
        %v345 = vld [vmem:[%s214 + $0x2] sm:$0xff]
        %v346 = vld [vmem:[%s214 + $0xa] sm:$0xff]
        %v347 = vld [vmem:[%s214 + $0x1a] sm:$0xff]
        %v348 = vld [vmem:[%s214 + $0x22] sm:$0xff]
        %v349 = vld [vmem:[%s214 + $0x32] sm:$0xff]
        %v350 = vld [vmem:[%s214 + $0x3a] sm:$0xff]
        %v351 = vld [vmem:[%s214 + $0x4a] sm:$0xff]
        %v352 = vld [vmem:[%s214 + $0x52] sm:$0xff]
        %v353 = vld [vmem:[%s214 + $0x62] sm:$0xff]
        %v354 = vld [vmem:[%s214 + $0x6a] sm:$0xff]
        %v355 = vld [vmem:[%s214 + $0x7a] sm:$0xff]
        %v356 = vld [vmem:[%s214 + $0x82] sm:$0xff]
        %v357 = vld [vmem:[%s214 + $0x92] sm:$0xff]
        %v358 = vld [vmem:[%s214 + $0x9a] sm:$0xff]
        %v359 = vld [vmem:[%s214 + $0xaa] sm:$0xff]
        %v360 = vld [vmem:[%s214 + $0xb2] sm:$0xff]
        %377 = vrot.lane.b32.xlu0 %v345, 8
        %v378 = vpop.permute.xlu0 %377
        %379 = vrot.lane.b32.xlu0 %v346, 8
        %v380 = vpop.permute.xlu0 %379
        %381 = vrot.lane.b32.xlu0 %v347, 8
        %v382 = vpop.permute.xlu0 %381
        %383 = vrot.lane.b32.xlu0 %v348, 8
        %v384 = vpop.permute.xlu0 %383
        %385 = vrot.lane.b32.xlu0 %v349, 8
        %v386 = vpop.permute.xlu0 %385
        %387 = vrot.lane.b32.xlu0 %v350, 8
        %v388 = vpop.permute.xlu0 %387
        %389 = vrot.lane.b32.xlu0 %v351, 8
        %v390 = vpop.permute.xlu0 %389
        %391 = vrot.lane.b32.xlu0 %v352, 8
        %v392 = vpop.permute.xlu0 %391
        %393 = vrot.lane.b32.xlu0 %v353, 8
        %v394 = vpop.permute.xlu0 %393
        %395 = vrot.lane.b32.xlu0 %v354, 8
        %v396 = vpop.permute.xlu0 %395
        %397 = vrot.lane.b32.xlu0 %v355, 8
        %v398 = vpop.permute.xlu0 %397
        %399 = vrot.lane.b32.xlu0 %v356, 8
        %v400 = vpop.permute.xlu0 %399
        %401 = vrot.lane.b32.xlu0 %v357, 8
        %v402 = vpop.permute.xlu0 %401
        %403 = vrot.lane.b32.xlu0 %v358, 8
        %v404 = vpop.permute.xlu0 %403
        %405 = vrot.lane.b32.xlu0 %v359, 8
        %v406 = vpop.permute.xlu0 %405
        %407 = vrot.lane.b32.xlu0 %v360, 8
        %v408 = vpop.permute.xlu0 %407
        %vm425 = vcmask 97344
        %426 = vst.msk [vmem:[#allocation2] sm:$0xff] %vm425, %v378
        %427 = vst.msk [vmem:[#allocation2 + $0x8] sm:$0xff] %vm425, %v380
        %428 = vst.msk [vmem:[#allocation2 + $0x10] sm:$0xff] %vm425, %v382
        %429 = vst.msk [vmem:[#allocation2 + $0x18] sm:$0xff] %vm425, %v384
        %430 = vst.msk [vmem:[#allocation2 + $0x20] sm:$0xff] %vm425, %v386
        %431 = vst.msk [vmem:[#allocation2 + $0x28] sm:$0xff] %vm425, %v388
        %432 = vst.msk [vmem:[#allocation2 + $0x30] sm:$0xff] %vm425, %v390
        %433 = vst.msk [vmem:[#allocation2 + $0x38] sm:$0xff] %vm425, %v392
        %434 = vst.msk [vmem:[#allocation2 + $0x40] sm:$0xff] %vm425, %v394
        %435 = vst.msk [vmem:[#allocation2 + $0x48] sm:$0xff] %vm425, %v396
        %436 = vst.msk [vmem:[#allocation2 + $0x50] sm:$0xff] %vm425, %v398
        %437 = vst.msk [vmem:[#allocation2 + $0x58] sm:$0xff] %vm425, %v400
        %438 = vst.msk [vmem:[#allocation2 + $0x60] sm:$0xff] %vm425, %v402
        %439 = vst.msk [vmem:[#allocation2 + $0x68] sm:$0xff] %vm425, %v404
        %440 = vst.msk [vmem:[#allocation2 + $0x70] sm:$0xff] %vm425, %v406
        %441 = vst.msk [vmem:[#allocation2 + $0x78] sm:$0xff] %vm425, %v408
        %s442 = sadd.s32 %s212, 1
        %s443 = smul.u32 %s442, 24
        %s444 = scalar_lea.vmem %s210, %s443
        %v445 = vld [vmem:[%s444] sm:$0xff]
        %v446 = vld [vmem:[%s444 + $0x8] sm:$0xff]
        %v447 = vld [vmem:[%s444 + $0x18] sm:$0xff]
        %v448 = vld [vmem:[%s444 + $0x20] sm:$0xff]
        %v449 = vld [vmem:[%s444 + $0x30] sm:$0xff]
        %v450 = vld [vmem:[%s444 + $0x38] sm:$0xff]
        %v451 = vld [vmem:[%s444 + $0x48] sm:$0xff]
        %v452 = vld [vmem:[%s444 + $0x50] sm:$0xff]
        %v453 = vld [vmem:[%s444 + $0x60] sm:$0xff]
        %v454 = vld [vmem:[%s444 + $0x68] sm:$0xff]
        %v455 = vld [vmem:[%s444 + $0x78] sm:$0xff]
        %v456 = vld [vmem:[%s444 + $0x80] sm:$0xff]
        %v457 = vld [vmem:[%s444 + $0x90] sm:$0xff]
        %v458 = vld [vmem:[%s444 + $0x98] sm:$0xff]
        %v459 = vld [vmem:[%s444 + $0xa8] sm:$0xff]
        %v460 = vld [vmem:[%s444 + $0xb0] sm:$0xff]
        %477 = vrot.lane.b32.xlu0 %v445, 12
        %v478 = vpop.permute.xlu0 %477
        %479 = vrot.lane.b32.xlu0 %v446, 12
        %v480 = vpop.permute.xlu0 %479
        %481 = vrot.lane.b32.xlu0 %v447, 12
        %v482 = vpop.permute.xlu0 %481
        %483 = vrot.lane.b32.xlu0 %v448, 12
        %v484 = vpop.permute.xlu0 %483
        %485 = vrot.lane.b32.xlu0 %v449, 12
        %v486 = vpop.permute.xlu0 %485
        %487 = vrot.lane.b32.xlu0 %v450, 12
        %v488 = vpop.permute.xlu0 %487
        %489 = vrot.lane.b32.xlu0 %v451, 12
        %v490 = vpop.permute.xlu0 %489
        %491 = vrot.lane.b32.xlu0 %v452, 12
        %v492 = vpop.permute.xlu0 %491
        %493 = vrot.lane.b32.xlu0 %v453, 12
        %v494 = vpop.permute.xlu0 %493
        %495 = vrot.lane.b32.xlu0 %v454, 12
        %v496 = vpop.permute.xlu0 %495
        %497 = vrot.lane.b32.xlu0 %v455, 12
        %v498 = vpop.permute.xlu0 %497
        %499 = vrot.lane.b32.xlu0 %v456, 12
        %v500 = vpop.permute.xlu0 %499
        %501 = vrot.lane.b32.xlu0 %v457, 12
        %v502 = vpop.permute.xlu0 %501
        %503 = vrot.lane.b32.xlu0 %v458, 12
        %v504 = vpop.permute.xlu0 %503
        %505 = vrot.lane.b32.xlu0 %v459, 12
        %v506 = vpop.permute.xlu0 %505
        %507 = vrot.lane.b32.xlu0 %v460, 12
        %v508 = vpop.permute.xlu0 %507
        %vm525 = vcmask 130144
        %526 = vst.msk [vmem:[#allocation2] sm:$0xff] %vm525, %v478
        %527 = vst.msk [vmem:[#allocation2 + $0x8] sm:$0xff] %vm525, %v480
        %528 = vst.msk [vmem:[#allocation2 + $0x10] sm:$0xff] %vm525, %v482
        %529 = vst.msk [vmem:[#allocation2 + $0x18] sm:$0xff] %vm525, %v484
        %530 = vst.msk [vmem:[#allocation2 + $0x20] sm:$0xff] %vm525, %v486
        %531 = vst.msk [vmem:[#allocation2 + $0x28] sm:$0xff] %vm525, %v488
        %532 = vst.msk [vmem:[#allocation2 + $0x30] sm:$0xff] %vm525, %v490
        %533 = vst.msk [vmem:[#allocation2 + $0x38] sm:$0xff] %vm525, %v492
        %534 = vst.msk [vmem:[#allocation2 + $0x40] sm:$0xff] %vm525, %v494
        %535 = vst.msk [vmem:[#allocation2 + $0x48] sm:$0xff] %vm525, %v496
        %536 = vst.msk [vmem:[#allocation2 + $0x50] sm:$0xff] %vm525, %v498
        %537 = vst.msk [vmem:[#allocation2 + $0x58] sm:$0xff] %vm525, %v500
        %538 = vst.msk [vmem:[#allocation2 + $0x60] sm:$0xff] %vm525, %v502
        %539 = vst.msk [vmem:[#allocation2 + $0x68] sm:$0xff] %vm525, %v504
        %540 = vst.msk [vmem:[#allocation2 + $0x70] sm:$0xff] %vm525, %v506
        %541 = vst.msk [vmem:[#allocation2 + $0x78] sm:$0xff] %vm525, %v508
        %v542 = vld [vmem:[%s444 + $0x1] sm:$0xff]
        %v543 = vld [vmem:[%s444 + $0x9] sm:$0xff]
        %v544 = vld [vmem:[%s444 + $0x19] sm:$0xff]
        %v545 = vld [vmem:[%s444 + $0x21] sm:$0xff]
        %v546 = vld [vmem:[%s444 + $0x31] sm:$0xff]
        %v547 = vld [vmem:[%s444 + $0x39] sm:$0xff]
        %v548 = vld [vmem:[%s444 + $0x49] sm:$0xff]
        %v549 = vld [vmem:[%s444 + $0x51] sm:$0xff]
        %v550 = vld [vmem:[%s444 + $0x61] sm:$0xff]
        %v551 = vld [vmem:[%s444 + $0x69] sm:$0xff]
        %v552 = vld [vmem:[%s444 + $0x79] sm:$0xff]
        %v553 = vld [vmem:[%s444 + $0x81] sm:$0xff]
        %v554 = vld [vmem:[%s444 + $0x91] sm:$0xff]
        %v555 = vld [vmem:[%s444 + $0x99] sm:$0xff]
        %v556 = vld [vmem:[%s444 + $0xa9] sm:$0xff]
        %v557 = vld [vmem:[%s444 + $0xb1] sm:$0xff]
        %574 = vrot.lane.b32.xlu0 %v542, 16
        %v575 = vpop.permute.xlu0 %574
        %576 = vrot.lane.b32.xlu0 %v543, 16
        %v577 = vpop.permute.xlu0 %576
        %578 = vrot.lane.b32.xlu0 %v544, 16
        %v579 = vpop.permute.xlu0 %578
        %580 = vrot.lane.b32.xlu0 %v545, 16
        %v581 = vpop.permute.xlu0 %580
        %582 = vrot.lane.b32.xlu0 %v546, 16
        %v583 = vpop.permute.xlu0 %582
        %584 = vrot.lane.b32.xlu0 %v547, 16
        %v585 = vpop.permute.xlu0 %584
        %586 = vrot.lane.b32.xlu0 %v548, 16
        %v587 = vpop.permute.xlu0 %586
        %588 = vrot.lane.b32.xlu0 %v549, 16
        %v589 = vpop.permute.xlu0 %588
        %590 = vrot.lane.b32.xlu0 %v550, 16
        %v591 = vpop.permute.xlu0 %590
        %592 = vrot.lane.b32.xlu0 %v551, 16
        %v593 = vpop.permute.xlu0 %592
        %594 = vrot.lane.b32.xlu0 %v552, 16
        %v595 = vpop.permute.xlu0 %594
        %596 = vrot.lane.b32.xlu0 %v553, 16
        %v597 = vpop.permute.xlu0 %596
        %598 = vrot.lane.b32.xlu0 %v554, 16
        %v599 = vpop.permute.xlu0 %598
        %600 = vrot.lane.b32.xlu0 %v555, 16
        %v601 = vpop.permute.xlu0 %600
        %602 = vrot.lane.b32.xlu0 %v556, 16
        %v603 = vpop.permute.xlu0 %602
        %604 = vrot.lane.b32.xlu0 %v557, 16
        %v605 = vpop.permute.xlu0 %604
        %vm622 = vcmask 162944
        %623 = vst.msk [vmem:[#allocation2] sm:$0xff] %vm622, %v575
        %624 = vst.msk [vmem:[#allocation2 + $0x8] sm:$0xff] %vm622, %v577
        %625 = vst.msk [vmem:[#allocation2 + $0x10] sm:$0xff] %vm622, %v579
        %626 = vst.msk [vmem:[#allocation2 + $0x18] sm:$0xff] %vm622, %v581
        %627 = vst.msk [vmem:[#allocation2 + $0x20] sm:$0xff] %vm622, %v583
        %628 = vst.msk [vmem:[#allocation2 + $0x28] sm:$0xff] %vm622, %v585
        %629 = vst.msk [vmem:[#allocation2 + $0x30] sm:$0xff] %vm622, %v587
        %630 = vst.msk [vmem:[#allocation2 + $0x38] sm:$0xff] %vm622, %v589
        %631 = vst.msk [vmem:[#allocation2 + $0x40] sm:$0xff] %vm622, %v591
        %632 = vst.msk [vmem:[#allocation2 + $0x48] sm:$0xff] %vm622, %v593
        %633 = vst.msk [vmem:[#allocation2 + $0x50] sm:$0xff] %vm622, %v595
        %634 = vst.msk [vmem:[#allocation2 + $0x58] sm:$0xff] %vm622, %v597
        %635 = vst.msk [vmem:[#allocation2 + $0x60] sm:$0xff] %vm622, %v599
        %636 = vst.msk [vmem:[#allocation2 + $0x68] sm:$0xff] %vm622, %v601
        %637 = vst.msk [vmem:[#allocation2 + $0x70] sm:$0xff] %vm622, %v603
        %638 = vst.msk [vmem:[#allocation2 + $0x78] sm:$0xff] %vm622, %v605
        %v639 = vld [vmem:[%s444 + $0x2] sm:$0xff]
        %v640 = vld [vmem:[%s444 + $0xa] sm:$0xff]
        %v641 = vld [vmem:[%s444 + $0x1a] sm:$0xff]
        %v642 = vld [vmem:[%s444 + $0x22] sm:$0xff]
        %v643 = vld [vmem:[%s444 + $0x32] sm:$0xff]
        %v644 = vld [vmem:[%s444 + $0x3a] sm:$0xff]
        %v645 = vld [vmem:[%s444 + $0x4a] sm:$0xff]
        %v646 = vld [vmem:[%s444 + $0x52] sm:$0xff]
        %v647 = vld [vmem:[%s444 + $0x62] sm:$0xff]
        %v648 = vld [vmem:[%s444 + $0x6a] sm:$0xff]
        %v649 = vld [vmem:[%s444 + $0x7a] sm:$0xff]
        %v650 = vld [vmem:[%s444 + $0x82] sm:$0xff]
        %v651 = vld [vmem:[%s444 + $0x92] sm:$0xff]
        %v652 = vld [vmem:[%s444 + $0x9a] sm:$0xff]
        %v653 = vld [vmem:[%s444 + $0xaa] sm:$0xff]
        %v654 = vld [vmem:[%s444 + $0xb2] sm:$0xff]
        %671 = vrot.lane.b32.xlu0 %v639, 20
        %v672 = vpop.permute.xlu0 %671
        %673 = vrot.lane.b32.xlu0 %v640, 20
        %v674 = vpop.permute.xlu0 %673
        %675 = vrot.lane.b32.xlu0 %v641, 20
        %v676 = vpop.permute.xlu0 %675
        %677 = vrot.lane.b32.xlu0 %v642, 20
        %v678 = vpop.permute.xlu0 %677
        %679 = vrot.lane.b32.xlu0 %v643, 20
        %v680 = vpop.permute.xlu0 %679
        %681 = vrot.lane.b32.xlu0 %v644, 20
        %v682 = vpop.permute.xlu0 %681
        %683 = vrot.lane.b32.xlu0 %v645, 20
        %v684 = vpop.permute.xlu0 %683
        %685 = vrot.lane.b32.xlu0 %v646, 20
        %v686 = vpop.permute.xlu0 %685
        %687 = vrot.lane.b32.xlu0 %v647, 20
        %v688 = vpop.permute.xlu0 %687
        %689 = vrot.lane.b32.xlu0 %v648, 20
        %v690 = vpop.permute.xlu0 %689
        %691 = vrot.lane.b32.xlu0 %v649, 20
        %v692 = vpop.permute.xlu0 %691
        %693 = vrot.lane.b32.xlu0 %v650, 20
        %v694 = vpop.permute.xlu0 %693
        %695 = vrot.lane.b32.xlu0 %v651, 20
        %v696 = vpop.permute.xlu0 %695
        %697 = vrot.lane.b32.xlu0 %v652, 20
        %v698 = vpop.permute.xlu0 %697
        %699 = vrot.lane.b32.xlu0 %v653, 20
        %v700 = vpop.permute.xlu0 %699
        %701 = vrot.lane.b32.xlu0 %v654, 20
        %v702 = vpop.permute.xlu0 %701
        %vm719 = vcmask 195744
        %720 = vst.msk [vmem:[#allocation2] sm:$0xff] %vm719, %v672
        %721 = vst.msk [vmem:[#allocation2 + $0x8] sm:$0xff] %vm719, %v674
        %722 = vst.msk [vmem:[#allocation2 + $0x10] sm:$0xff] %vm719, %v676
        %723 = vst.msk [vmem:[#allocation2 + $0x18] sm:$0xff] %vm719, %v678
        %724 = vst.msk [vmem:[#allocation2 + $0x20] sm:$0xff] %vm719, %v680
        %725 = vst.msk [vmem:[#allocation2 + $0x28] sm:$0xff] %vm719, %v682
        %726 = vst.msk [vmem:[#allocation2 + $0x30] sm:$0xff] %vm719, %v684
        %727 = vst.msk [vmem:[#allocation2 + $0x38] sm:$0xff] %vm719, %v686
        %728 = vst.msk [vmem:[#allocation2 + $0x40] sm:$0xff] %vm719, %v688
        %729 = vst.msk [vmem:[#allocation2 + $0x48] sm:$0xff] %vm719, %v690
        %730 = vst.msk [vmem:[#allocation2 + $0x50] sm:$0xff] %vm719, %v692
        %731 = vst.msk [vmem:[#allocation2 + $0x58] sm:$0xff] %vm719, %v694
        %732 = vst.msk [vmem:[#allocation2 + $0x60] sm:$0xff] %vm719, %v696
        %733 = vst.msk [vmem:[#allocation2 + $0x68] sm:$0xff] %vm719, %v698
        %734 = vst.msk [vmem:[#allocation2 + $0x70] sm:$0xff] %vm719, %v700
        %735 = vst.msk [vmem:[#allocation2 + $0x78] sm:$0xff] %vm719, %v702
        %s736 = sadd.s32 %s212, 2
        %s737 = smul.u32 %s736, 24
        %s738 = scalar_lea.vmem %s210, %s737
        %v739 = vld [vmem:[%s738] sm:$0xff]
        %v740 = vld [vmem:[%s738 + $0x8] sm:$0xff]
        %v741 = vld [vmem:[%s738 + $0x18] sm:$0xff]
        %v742 = vld [vmem:[%s738 + $0x20] sm:$0xff]
        %v743 = vld [vmem:[%s738 + $0x30] sm:$0xff]
        %v744 = vld [vmem:[%s738 + $0x38] sm:$0xff]
        %v745 = vld [vmem:[%s738 + $0x48] sm:$0xff]
        %v746 = vld [vmem:[%s738 + $0x50] sm:$0xff]
        %v747 = vld [vmem:[%s738 + $0x60] sm:$0xff]
        %v748 = vld [vmem:[%s738 + $0x68] sm:$0xff]
        %v749 = vld [vmem:[%s738 + $0x78] sm:$0xff]
        %v750 = vld [vmem:[%s738 + $0x80] sm:$0xff]
        %v751 = vld [vmem:[%s738 + $0x90] sm:$0xff]
        %v752 = vld [vmem:[%s738 + $0x98] sm:$0xff]
        %v753 = vld [vmem:[%s738 + $0xa8] sm:$0xff]
        %v754 = vld [vmem:[%s738 + $0xb0] sm:$0xff]
        %771 = vrot.lane.b32.xlu0 %v739, 24
        %v772 = vpop.permute.xlu0 %771
        %773 = vrot.lane.b32.xlu0 %v740, 24
        %v774 = vpop.permute.xlu0 %773
        %775 = vrot.lane.b32.xlu0 %v741, 24
        %v776 = vpop.permute.xlu0 %775
        %777 = vrot.lane.b32.xlu0 %v742, 24
        %v778 = vpop.permute.xlu0 %777
        %779 = vrot.lane.b32.xlu0 %v743, 24
        %v780 = vpop.permute.xlu0 %779
        %781 = vrot.lane.b32.xlu0 %v744, 24
        %v782 = vpop.permute.xlu0 %781
        %783 = vrot.lane.b32.xlu0 %v745, 24
        %v784 = vpop.permute.xlu0 %783
        %785 = vrot.lane.b32.xlu0 %v746, 24
        %v786 = vpop.permute.xlu0 %785
        %787 = vrot.lane.b32.xlu0 %v747, 24
        %v788 = vpop.permute.xlu0 %787
        %789 = vrot.lane.b32.xlu0 %v748, 24
        %v790 = vpop.permute.xlu0 %789
        %791 = vrot.lane.b32.xlu0 %v749, 24
        %v792 = vpop.permute.xlu0 %791
        %793 = vrot.lane.b32.xlu0 %v750, 24
        %v794 = vpop.permute.xlu0 %793
        %795 = vrot.lane.b32.xlu0 %v751, 24
        %v796 = vpop.permute.xlu0 %795
        %797 = vrot.lane.b32.xlu0 %v752, 24
        %v798 = vpop.permute.xlu0 %797
        %799 = vrot.lane.b32.xlu0 %v753, 24
        %v800 = vpop.permute.xlu0 %799
        %801 = vrot.lane.b32.xlu0 %v754, 24
        %v802 = vpop.permute.xlu0 %801
        %vm819 = vcmask 228544
        %820 = vst.msk [vmem:[#allocation2] sm:$0xff] %vm819, %v772
        %821 = vst.msk [vmem:[#allocation2 + $0x8] sm:$0xff] %vm819, %v774
        %822 = vst.msk [vmem:[#allocation2 + $0x10] sm:$0xff] %vm819, %v776
        %823 = vst.msk [vmem:[#allocation2 + $0x18] sm:$0xff] %vm819, %v778
        %824 = vst.msk [vmem:[#allocation2 + $0x20] sm:$0xff] %vm819, %v780
        %825 = vst.msk [vmem:[#allocation2 + $0x28] sm:$0xff] %vm819, %v782
        %826 = vst.msk [vmem:[#allocation2 + $0x30] sm:$0xff] %vm819, %v784
        %827 = vst.msk [vmem:[#allocation2 + $0x38] sm:$0xff] %vm819, %v786
        %828 = vst.msk [vmem:[#allocation2 + $0x40] sm:$0xff] %vm819, %v788
        %829 = vst.msk [vmem:[#allocation2 + $0x48] sm:$0xff] %vm819, %v790
        %830 = vst.msk [vmem:[#allocation2 + $0x50] sm:$0xff] %vm819, %v792
        %831 = vst.msk [vmem:[#allocation2 + $0x58] sm:$0xff] %vm819, %v794
        %832 = vst.msk [vmem:[#allocation2 + $0x60] sm:$0xff] %vm819, %v796
        %833 = vst.msk [vmem:[#allocation2 + $0x68] sm:$0xff] %vm819, %v798
        %834 = vst.msk [vmem:[#allocation2 + $0x70] sm:$0xff] %vm819, %v800
        %835 = vst.msk [vmem:[#allocation2 + $0x78] sm:$0xff] %vm819, %v802
        %v836 = vld [vmem:[%s738 + $0x1] sm:$0xff]
        %v837 = vld [vmem:[%s738 + $0x9] sm:$0xff]
        %v838 = vld [vmem:[%s738 + $0x19] sm:$0xff]
        %v839 = vld [vmem:[%s738 + $0x21] sm:$0xff]
        %v840 = vld [vmem:[%s738 + $0x31] sm:$0xff]
        %v841 = vld [vmem:[%s738 + $0x39] sm:$0xff]
        %v842 = vld [vmem:[%s738 + $0x49] sm:$0xff]
        %v843 = vld [vmem:[%s738 + $0x51] sm:$0xff]
        %v844 = vld [vmem:[%s738 + $0x61] sm:$0xff]
        %v845 = vld [vmem:[%s738 + $0x69] sm:$0xff]
        %v846 = vld [vmem:[%s738 + $0x79] sm:$0xff]
        %v847 = vld [vmem:[%s738 + $0x81] sm:$0xff]
        %v848 = vld [vmem:[%s738 + $0x91] sm:$0xff]
        %v849 = vld [vmem:[%s738 + $0x99] sm:$0xff]
        %v850 = vld [vmem:[%s738 + $0xa9] sm:$0xff]
        %v851 = vld [vmem:[%s738 + $0xb1] sm:$0xff]
        %868 = vrot.lane.b32.xlu0 %v836, 28
        %v869 = vpop.permute.xlu0 %868
        %870 = vrot.lane.b32.xlu0 %v837, 28
        %v871 = vpop.permute.xlu0 %870
        %872 = vrot.lane.b32.xlu0 %v838, 28
        %v873 = vpop.permute.xlu0 %872
        %874 = vrot.lane.b32.xlu0 %v839, 28
        %v875 = vpop.permute.xlu0 %874
        %876 = vrot.lane.b32.xlu0 %v840, 28
        %v877 = vpop.permute.xlu0 %876
        %878 = vrot.lane.b32.xlu0 %v841, 28
        %v879 = vpop.permute.xlu0 %878
        %880 = vrot.lane.b32.xlu0 %v842, 28
        %v881 = vpop.permute.xlu0 %880
        %882 = vrot.lane.b32.xlu0 %v843, 28
        %v883 = vpop.permute.xlu0 %882
        %884 = vrot.lane.b32.xlu0 %v844, 28
        %v885 = vpop.permute.xlu0 %884
        %886 = vrot.lane.b32.xlu0 %v845, 28
        %v887 = vpop.permute.xlu0 %886
        %888 = vrot.lane.b32.xlu0 %v846, 28
        %v889 = vpop.permute.xlu0 %888
        %890 = vrot.lane.b32.xlu0 %v847, 28
        %v891 = vpop.permute.xlu0 %890
        %892 = vrot.lane.b32.xlu0 %v848, 28
        %v893 = vpop.permute.xlu0 %892
        %894 = vrot.lane.b32.xlu0 %v849, 28
        %v895 = vpop.permute.xlu0 %894
        %896 = vrot.lane.b32.xlu0 %v850, 28
        %v897 = vpop.permute.xlu0 %896
        %898 = vrot.lane.b32.xlu0 %v851, 28
        %v899 = vpop.permute.xlu0 %898
        %vm916 = vcmask 261344
        %917 = vst.msk [vmem:[#allocation2] sm:$0xff] %vm916, %v869
        %918 = vst.msk [vmem:[#allocation2 + $0x8] sm:$0xff] %vm916, %v871
        %919 = vst.msk [vmem:[#allocation2 + $0x10] sm:$0xff] %vm916, %v873
        %920 = vst.msk [vmem:[#allocation2 + $0x18] sm:$0xff] %vm916, %v875
        %921 = vst.msk [vmem:[#allocation2 + $0x20] sm:$0xff] %vm916, %v877
        %922 = vst.msk [vmem:[#allocation2 + $0x28] sm:$0xff] %vm916, %v879
        %923 = vst.msk [vmem:[#allocation2 + $0x30] sm:$0xff] %vm916, %v881
        %924 = vst.msk [vmem:[#allocation2 + $0x38] sm:$0xff] %vm916, %v883
        %925 = vst.msk [vmem:[#allocation2 + $0x40] sm:$0xff] %vm916, %v885
        %926 = vst.msk [vmem:[#allocation2 + $0x48] sm:$0xff] %vm916, %v887
        %927 = vst.msk [vmem:[#allocation2 + $0x50] sm:$0xff] %vm916, %v889
        %928 = vst.msk [vmem:[#allocation2 + $0x58] sm:$0xff] %vm916, %v891
        %929 = vst.msk [vmem:[#allocation2 + $0x60] sm:$0xff] %vm916, %v893
        %930 = vst.msk [vmem:[#allocation2 + $0x68] sm:$0xff] %vm916, %v895
        %931 = vst.msk [vmem:[#allocation2 + $0x70] sm:$0xff] %vm916, %v897
        %932 = vst.msk [vmem:[#allocation2 + $0x78] sm:$0xff] %vm916, %v899
        %v933 = vld [vmem:[%s738 + $0x2] sm:$0xff]
        %v934 = vld [vmem:[%s738 + $0xa] sm:$0xff]
        %v935 = vld [vmem:[%s738 + $0x1a] sm:$0xff]
        %v936 = vld [vmem:[%s738 + $0x22] sm:$0xff]
        %v937 = vld [vmem:[%s738 + $0x32] sm:$0xff]
        %v938 = vld [vmem:[%s738 + $0x3a] sm:$0xff]
        %v939 = vld [vmem:[%s738 + $0x4a] sm:$0xff]
        %v940 = vld [vmem:[%s738 + $0x52] sm:$0xff]
        %v941 = vld [vmem:[%s738 + $0x62] sm:$0xff]
        %v942 = vld [vmem:[%s738 + $0x6a] sm:$0xff]
        %v943 = vld [vmem:[%s738 + $0x7a] sm:$0xff]
        %v944 = vld [vmem:[%s738 + $0x82] sm:$0xff]
        %v945 = vld [vmem:[%s738 + $0x92] sm:$0xff]
        %v946 = vld [vmem:[%s738 + $0x9a] sm:$0xff]
        %v947 = vld [vmem:[%s738 + $0xaa] sm:$0xff]
        %v948 = vld [vmem:[%s738 + $0xb2] sm:$0xff]
        %965 = vrot.lane.b32.xlu0 %v933, 32
        %v966 = vpop.permute.xlu0 %965
        %967 = vrot.lane.b32.xlu0 %v934, 32
        %v968 = vpop.permute.xlu0 %967
        %969 = vrot.lane.b32.xlu0 %v935, 32
        %v970 = vpop.permute.xlu0 %969
        %971 = vrot.lane.b32.xlu0 %v936, 32
        %v972 = vpop.permute.xlu0 %971
        %973 = vrot.lane.b32.xlu0 %v937, 32
        %v974 = vpop.permute.xlu0 %973
        %975 = vrot.lane.b32.xlu0 %v938, 32
        %v976 = vpop.permute.xlu0 %975
        %977 = vrot.lane.b32.xlu0 %v939, 32
        %v978 = vpop.permute.xlu0 %977
        %979 = vrot.lane.b32.xlu0 %v940, 32
        %v980 = vpop.permute.xlu0 %979
        %981 = vrot.lane.b32.xlu0 %v941, 32
        %v982 = vpop.permute.xlu0 %981
        %983 = vrot.lane.b32.xlu0 %v942, 32
        %v984 = vpop.permute.xlu0 %983
        %985 = vrot.lane.b32.xlu0 %v943, 32
        %v986 = vpop.permute.xlu0 %985
        %987 = vrot.lane.b32.xlu0 %v944, 32
        %v988 = vpop.permute.xlu0 %987
        %989 = vrot.lane.b32.xlu0 %v945, 32
        %v990 = vpop.permute.xlu0 %989
        %991 = vrot.lane.b32.xlu0 %v946, 32
        %v992 = vpop.permute.xlu0 %991
        %993 = vrot.lane.b32.xlu0 %v947, 32
        %v994 = vpop.permute.xlu0 %993
        %995 = vrot.lane.b32.xlu0 %v948, 32
        %v996 = vpop.permute.xlu0 %995
        %vm1013 = vcmask 294144
        %1014 = vst.msk [vmem:[#allocation2] sm:$0xff] %vm1013, %v966
        %1015 = vst.msk [vmem:[#allocation2 + $0x8] sm:$0xff] %vm1013, %v968
        %1016 = vst.msk [vmem:[#allocation2 + $0x10] sm:$0xff] %vm1013, %v970
        %1017 = vst.msk [vmem:[#allocation2 + $0x18] sm:$0xff] %vm1013, %v972
        %1018 = vst.msk [vmem:[#allocation2 + $0x20] sm:$0xff] %vm1013, %v974
        %1019 = vst.msk [vmem:[#allocation2 + $0x28] sm:$0xff] %vm1013, %v976
        %1020 = vst.msk [vmem:[#allocation2 + $0x30] sm:$0xff] %vm1013, %v978
        %1021 = vst.msk [vmem:[#allocation2 + $0x38] sm:$0xff] %vm1013, %v980
        %1022 = vst.msk [vmem:[#allocation2 + $0x40] sm:$0xff] %vm1013, %v982
        %1023 = vst.msk [vmem:[#allocation2 + $0x48] sm:$0xff] %vm1013, %v984
        %1024 = vst.msk [vmem:[#allocation2 + $0x50] sm:$0xff] %vm1013, %v986
        %1025 = vst.msk [vmem:[#allocation2 + $0x58] sm:$0xff] %vm1013, %v988
        %1026 = vst.msk [vmem:[#allocation2 + $0x60] sm:$0xff] %vm1013, %v990
        %1027 = vst.msk [vmem:[#allocation2 + $0x68] sm:$0xff] %vm1013, %v992
        %1028 = vst.msk [vmem:[#allocation2 + $0x70] sm:$0xff] %vm1013, %v994
        %1029 = vst.msk [vmem:[#allocation2 + $0x78] sm:$0xff] %vm1013, %v996
        %vm1030 = vcmask 1047840
        %1031 = vst.msk [vmem:[#allocation2] sm:$0xff] %vm1030, 0.0
        %1032 = vst.msk [vmem:[#allocation2 + $0x8] sm:$0xff] %vm1030, 0.0
        %1033 = vst.msk [vmem:[#allocation2 + $0x10] sm:$0xff] %vm1030, 0.0
        %1034 = vst.msk [vmem:[#allocation2 + $0x18] sm:$0xff] %vm1030, 0.0
        %1035 = vst.msk [vmem:[#allocation2 + $0x20] sm:$0xff] %vm1030, 0.0
        %1036 = vst.msk [vmem:[#allocation2 + $0x28] sm:$0xff] %vm1030, 0.0
        %1037 = vst.msk [vmem:[#allocation2 + $0x30] sm:$0xff] %vm1030, 0.0
        %1038 = vst.msk [vmem:[#allocation2 + $0x38] sm:$0xff] %vm1030, 0.0
        %1039 = vst.msk [vmem:[#allocation2 + $0x40] sm:$0xff] %vm1030, 0.0
        %1040 = vst.msk [vmem:[#allocation2 + $0x48] sm:$0xff] %vm1030, 0.0
        %1041 = vst.msk [vmem:[#allocation2 + $0x50] sm:$0xff] %vm1030, 0.0
        %1042 = vst.msk [vmem:[#allocation2 + $0x58] sm:$0xff] %vm1030, 0.0
        %1043 = vst.msk [vmem:[#allocation2 + $0x60] sm:$0xff] %vm1030, 0.0
        %1044 = vst.msk [vmem:[#allocation2 + $0x68] sm:$0xff] %vm1030, 0.0
        %1045 = vst.msk [vmem:[#allocation2 + $0x70] sm:$0xff] %vm1030, 0.0
        %1046 = vst.msk [vmem:[#allocation2 + $0x78] sm:$0xff] %vm1030, 0.0
        %v1047 = vld [vmem:[#allocation2] sm:$0xff]
        %v1048 = vld [vmem:[#allocation2 + $0x8] sm:$0xff]
        %v1049 = vld [vmem:[#allocation2 + $0x10] sm:$0xff]
        %v1050 = vld [vmem:[#allocation2 + $0x18] sm:$0xff]
        %v1051 = vld [vmem:[#allocation2 + $0x20] sm:$0xff]
        %v1052 = vld [vmem:[#allocation2 + $0x28] sm:$0xff]
        %v1053 = vld [vmem:[#allocation2 + $0x30] sm:$0xff]
        %v1054 = vld [vmem:[#allocation2 + $0x38] sm:$0xff]
        %v1055 = vld [vmem:[#allocation2 + $0x40] sm:$0xff]
        %v1056 = vld [vmem:[#allocation2 + $0x48] sm:$0xff]
        %v1057 = vld [vmem:[#allocation2 + $0x50] sm:$0xff]
        %v1058 = vld [vmem:[#allocation2 + $0x58] sm:$0xff]
        %v1059 = vld [vmem:[#allocation2 + $0x60] sm:$0xff]
        %v1060 = vld [vmem:[#allocation2 + $0x68] sm:$0xff]
        %v1061 = vld [vmem:[#allocation2 + $0x70] sm:$0xff]
        %v1062 = vld [vmem:[#allocation2 + $0x78] sm:$0xff]
        %v1063 = vld [vmem:[%s2] sm:$0xff]
        %v1064 = vld [vmem:[%s2 + $0x8] sm:$0xff]
        %v1065 = vld [vmem:[%s2 + $0x10] sm:$0xff]
        %v1066 = vld [vmem:[%s2 + $0x18] sm:$0xff]
        %v1067 = vld [vmem:[%s2 + $0x20] sm:$0xff]
        %v1068 = vld [vmem:[%s2 + $0x28] sm:$0xff]
        %v1069 = vld [vmem:[%s2 + $0x30] sm:$0xff]
        %v1070 = vld [vmem:[%s2 + $0x38] sm:$0xff]
        %v1071 = vld [vmem:[%s2 + $0x40] sm:$0xff]
        %v1072 = vld [vmem:[%s2 + $0x48] sm:$0xff]
        %v1073 = vld [vmem:[%s2 + $0x50] sm:$0xff]
        %v1074 = vld [vmem:[%s2 + $0x58] sm:$0xff]
        %v1075 = vld [vmem:[%s2 + $0x60] sm:$0xff]
        %v1076 = vld [vmem:[%s2 + $0x68] sm:$0xff]
        %v1077 = vld [vmem:[%s2 + $0x70] sm:$0xff]
        %v1078 = vld [vmem:[%s2 + $0x78] sm:$0xff]
        %v1079 = vld [vmem:[%s3] sm:$0x1]
        %v1081 = vperm.slane %v1079, 0
        %1083 = vmatpush.msra.mxu0 %v1078
        %1084 = vmatpush.msra.mxu0 %v1077
        %1085 = vmatpush.msra.mxu0 %v1076
        %1086 = vmatpush.msra.mxu0 %v1075
        %1087 = vmatpush.msra.mxu0 %v1074
        %1088 = vmatpush.msra.mxu0 %v1073
        %1089 = vmatpush.msra.mxu0 %v1072
        %1090 = vmatpush.msra.mxu0 %v1071
        %1091 = vmatpush.msra.mxu0 %v1070
        %1092 = vmatpush.msra.mxu0 %v1069
        %1093 = vmatpush.msra.mxu0 %v1068
        %1094 = vmatpush.msra.mxu0 %v1067
        %1095 = vmatpush.msra.mxu0 %v1066
        %1096 = vmatpush.msra.mxu0 %v1065
        %1097 = vmatpush.msra.mxu0 %v1064
        %1098 = vmatpush.msra.mxu0 %v1063
        %1099 = vmatmul.f32.gmra.mxu0 %v1047
        %v1100 = vpop.f32.mrf.mxu0
        %v1101 = vadd.f32 %v1081, %v1100
        %1102 = vmatmul.f32.gmra.mxu0 %v1048
        %v1103 = vpop.f32.mrf.mxu0
        %v1104 = vadd.f32 %v1081, %v1103
        %1105 = vmatmul.f32.gmra.mxu0 %v1049
        %v1106 = vpop.f32.mrf.mxu0
        %v1107 = vadd.f32 %v1081, %v1106
        %1108 = vmatmul.f32.gmra.mxu0 %v1050
        %v1109 = vpop.f32.mrf.mxu0
        %v1110 = vadd.f32 %v1081, %v1109
        %1111 = vmatmul.f32.gmra.mxu0 %v1051
        %v1112 = vpop.f32.mrf.mxu0
        %v1113 = vadd.f32 %v1081, %v1112
        %1114 = vmatmul.f32.gmra.mxu0 %v1052
        %v1115 = vpop.f32.mrf.mxu0
        %v1116 = vadd.f32 %v1081, %v1115
        %1117 = vmatmul.f32.gmra.mxu0 %v1053
        %v1118 = vpop.f32.mrf.mxu0
        %v1119 = vadd.f32 %v1081, %v1118
        %1120 = vmatmul.f32.gmra.mxu0 %v1054
        %v1121 = vpop.f32.mrf.mxu0
        %v1122 = vadd.f32 %v1081, %v1121
        %1123 = vmatmul.f32.gmra.mxu0 %v1055
        %v1124 = vpop.f32.mrf.mxu0
        %v1125 = vadd.f32 %v1081, %v1124
        %1126 = vmatmul.f32.gmra.mxu0 %v1056
        %v1127 = vpop.f32.mrf.mxu0
        %v1128 = vadd.f32 %v1081, %v1127
        %1129 = vmatmul.f32.gmra.mxu0 %v1057
        %v1130 = vpop.f32.mrf.mxu0
        %v1131 = vadd.f32 %v1081, %v1130
        %1132 = vmatmul.f32.gmra.mxu0 %v1058
        %v1133 = vpop.f32.mrf.mxu0
        %v1134 = vadd.f32 %v1081, %v1133
        %1135 = vmatmul.f32.gmra.mxu0 %v1059
        %v1136 = vpop.f32.mrf.mxu0
        %v1137 = vadd.f32 %v1081, %v1136
        %1138 = vmatmul.f32.gmra.mxu0 %v1060
        %v1139 = vpop.f32.mrf.mxu0
        %v1140 = vadd.f32 %v1081, %v1139
        %1141 = vmatmul.f32.gmra.mxu0 %v1061
        %v1142 = vpop.f32.mrf.mxu0
        %v1143 = vadd.f32 %v1081, %v1142
        %1144 = vmatmul.f32.gmra.mxu0 %v1062
        %v1145 = vpop.f32.mrf.mxu0
        %v1146 = vadd.f32 %v1081, %v1145
        %1147 = vdwg.mxu0
        %s1148 = sld [smem:[#allocation3]]
        %vm1149 = vcmp.gt.f32.partialorder %v1101, 0.0
        %vm1150 = vcmp.gt.f32.partialorder %v1104, 0.0
        %vm1151 = vcmp.gt.f32.partialorder %v1107, 0.0
        %vm1152 = vcmp.gt.f32.partialorder %v1110, 0.0
        %vm1153 = vcmp.gt.f32.partialorder %v1113, 0.0
        %vm1154 = vcmp.gt.f32.partialorder %v1116, 0.0
        %vm1155 = vcmp.gt.f32.partialorder %v1119, 0.0
        %vm1156 = vcmp.gt.f32.partialorder %v1122, 0.0
        %vm1157 = vcmp.gt.f32.partialorder %v1125, 0.0
        %vm1158 = vcmp.gt.f32.partialorder %v1128, 0.0
        %vm1159 = vcmp.gt.f32.partialorder %v1131, 0.0
        %vm1160 = vcmp.gt.f32.partialorder %v1134, 0.0
        %vm1161 = vcmp.gt.f32.partialorder %v1137, 0.0
        %vm1162 = vcmp.gt.f32.partialorder %v1140, 0.0
        %vm1163 = vcmp.gt.f32.partialorder %v1143, 0.0
        %vm1164 = vcmp.gt.f32.partialorder %v1146, 0.0
        %v1165 = vstv %s1148
        %v1166 = vmul.f32 %v1165, %v1101
        %v1167 = vmul.f32 %v1165, %v1104
        %v1168 = vmul.f32 %v1165, %v1107
        %v1169 = vmul.f32 %v1165, %v1110
        %v1170 = vmul.f32 %v1165, %v1113
        %v1171 = vmul.f32 %v1165, %v1116
        %v1172 = vmul.f32 %v1165, %v1119
        %v1173 = vmul.f32 %v1165, %v1122
        %v1174 = vmul.f32 %v1165, %v1125
        %v1175 = vmul.f32 %v1165, %v1128
        %v1176 = vmul.f32 %v1165, %v1131
        %v1177 = vmul.f32 %v1165, %v1134
        %v1178 = vmul.f32 %v1165, %v1137
        %v1179 = vmul.f32 %v1165, %v1140
        %v1180 = vmul.f32 %v1165, %v1143
        %v1181 = vmul.f32 %v1165, %v1146
        %v1182 = vsel %vm1149, %v1101, %v1166
        %v1183 = vsel %vm1150, %v1104, %v1167
        %v1184 = vsel %vm1151, %v1107, %v1168
        %v1185 = vsel %vm1152, %v1110, %v1169
        %v1186 = vsel %vm1153, %v1113, %v1170
        %v1187 = vsel %vm1154, %v1116, %v1171
        %v1188 = vsel %vm1155, %v1119, %v1172
        %v1189 = vsel %vm1156, %v1122, %v1173
        %v1190 = vsel %vm1157, %v1125, %v1174
        %v1191 = vsel %vm1158, %v1128, %v1175
        %v1192 = vsel %vm1159, %v1131, %v1176
        %v1193 = vsel %vm1160, %v1134, %v1177
        %v1194 = vsel %vm1161, %v1137, %v1178
        %v1195 = vsel %vm1162, %v1140, %v1179
        %v1196 = vsel %vm1163, %v1143, %v1180
        %v1197 = vsel %vm1164, %v1146, %v1181
        %vm1198 = vcmask 261120
        %1199 = vst.msk [vmem:[%s205] sm:$0xff] %vm1198, %v1182
        %1200 = vst.msk [vmem:[%s205 + $0x8] sm:$0xff] %vm1198, %v1183
        %1201 = vst.msk [vmem:[%s205 + $0x10] sm:$0xff] %vm1198, %v1184
        %1202 = vst.msk [vmem:[%s205 + $0x18] sm:$0xff] %vm1198, %v1185
        %1203 = vst.msk [vmem:[%s205 + $0x20] sm:$0xff] %vm1198, %v1186
        %1204 = vst.msk [vmem:[%s205 + $0x28] sm:$0xff] %vm1198, %v1187
        %1205 = vst.msk [vmem:[%s205 + $0x30] sm:$0xff] %vm1198, %v1188
        %1206 = vst.msk [vmem:[%s205 + $0x38] sm:$0xff] %vm1198, %v1189
        %1207 = vst.msk [vmem:[%s205 + $0x40] sm:$0xff] %vm1198, %v1190
        %1208 = vst.msk [vmem:[%s205 + $0x48] sm:$0xff] %vm1198, %v1191
        %1209 = vst.msk [vmem:[%s205 + $0x50] sm:$0xff] %vm1198, %v1192
        %1210 = vst.msk [vmem:[%s205 + $0x58] sm:$0xff] %vm1198, %v1193
        %1211 = vst.msk [vmem:[%s205 + $0x60] sm:$0xff] %vm1198, %v1194
        %1212 = vst.msk [vmem:[%s205 + $0x68] sm:$0xff] %vm1198, %v1195
        %1213 = vst.msk [vmem:[%s205 + $0x70] sm:$0xff] %vm1198, %v1196
        %1214 = vst.msk [vmem:[%s205 + $0x78] sm:$0xff] %vm1198, %v1197
        %s1215 = sand.u32 %s130, 1
        %s1216 = scalar_lea.sflag [#allocation5], %s1215
        %s1217 = sand.u32 %s130, 1
        %s1218 = smul.addr %s1217, 128
        %s1219 = scalar_lea.vmem [#allocation4], %s1218
        // Predicated region
        $region37: #{tpu_custom_call.1} parent=35 // pred_check
          %p1220 = pneg %p140
        $region38: #{tpu_custom_call.1} parent=35 // pred_check_branch
          %1222 = sbr.rel (%p1220) target = $region40
        $region39: #{tpu_custom_call.1} parent=35 // pred_region
          %s1223 = smul.u32 8, %s24
          %1225 = vsyncadd %s1216, 0
          %s1226 = smul.addr %s1223, 2
          %s1227 = smul.addr %s23, 32
          %s1228 = sadd.s32 %s1226, %s1227
          %s1229 = smul.addr %s1228, 8
          %s1230 = scalar_lea.hbm %s4, %s1229
          %s1231 = sshll.u32 %s1219, 4
          %s1232 = int_to_ptr.vmem [resolvable:$true] %s1231
          %s1233 = sshll.u32 %s1230, 4
          %s1234 = int_to_ptr.hbm [resolvable:$true] %s1233
          %1239 = dma.vmem_to_hbm [thread:$0]  %s1232, 2048, %s1234, %s1216, 128, 128, 8
        $region40: #{tpu_custom_call.1} parent=35 // pred_fallthru
          _
      $region36: #{tpu_custom_call.1} parent=5 // pred_fallthru
        _
      %p1240 = scmp.le.s32.totalorder 2, %s14
      // Predicated region
      $region41: #{tpu_custom_call.1} parent=5 // pred_check
        %p1241 = pneg %p1240
      $region42: #{tpu_custom_call.1} parent=5 // pred_check_branch
        %1243 = sbr.rel (%p1241) target = $region44
      $region43: #{tpu_custom_call.1} parent=5 // pred_region
        %s1244 = ssub.s32 %s14, 2
        // Predicated region
        $region45: #{tpu_custom_call.1} parent=43 // pred_check
          %p1245 = pneg %p146
        $region46: #{tpu_custom_call.1} parent=43 // pred_check_branch
          %1247 = sbr.rel (%p1245) target = $region48
        $region47: #{tpu_custom_call.1} parent=43 // pred_region
          %s1248 = sand.u32 %s131, 1
          %s1249 = scalar_lea.sflag [#allocation5], %s1248
          %s1250 = sand.u32 %s131, 1
          %s1251 = smul.addr %s1250, 128
          %s1252 = scalar_lea.vmem [#allocation4], %s1251
          %1254 = dma.done %s1249, 2048
        $region48: #{tpu_custom_call.1} parent=43 // pred_fallthru
          _
      $region44: #{tpu_custom_call.1} parent=5 // pred_fallthru
        _
    $region6: #{tpu_custom_call.1} parent=1 // loop_footer
      %s18 = sadd.s32 1, %s14
    $region7: #{tpu_custom_call.1} parent=1 // loop_footer_branch
      %13 = sbr.rel target = $region3
    $region8: #{tpu_custom_call.1} parent=1 // loop_exit
      _
    %1255 = vsyncpa [#allocation5], 1
    %s1256 = scalar_lea.sflag [#allocation5], 1
    %1257 = vsyncpa %s1256, 1

</llo_original>
